<compile_context>
chip_gen: v7x
topology: tpu7x:2x2x1
jax: 0.10.0
libtpu: 0.0.40
codegen_flags: <defaults>
</compile_context>

<pallas_src>
import jax
import jax.numpy as jnp
from jax.experimental import pallas as pl
from jax.experimental.pallas import tpu as pltpu

HIDDEN = 128
_LANES = 128


def _mlp_kernel(x_ref, w1_ref, b1_ref, w2_ref, b2_ref, w3_ref, b3_ref, o_ref):
    # x_ref: (1, TM) batch row (batch on lanes), f32.
    x = x_ref[...]
    # Layer 1 -- degenerate K=1 matmul done on the VPU as an outer-product
    # broadcast:  (H,1) * (1,TM) + (H,1)  ->  (H, TM), then ReLU.
    h1 = jnp.maximum(w1_ref[...] * x + b1_ref[...], 0.0)
    # Layer 2 -- the only real matmul: (H,H) @ (H,TM) on the MXU.
    # bf16 operands (single-pass MXU) with f32 accumulation.
    h1_bf = h1.astype(jnp.bfloat16)
    h2 = jnp.dot(w2_ref[...], h1_bf,
                 preferred_element_type=jnp.float32) + b2_ref[...]
    h2 = jnp.maximum(h2, 0.0)                                        # (H, TM) f32
    # Layer 3 -- degenerate N=1 matmul done as VPU multiply + sublane reduce.
    z = jnp.sum(w3_ref[...] * h2, axis=0, keepdims=True) + b3_ref[0]  # (1, TM)
    # sigmoid then negate: exp and reciprocal both route to the EUP slot
    # (otherwise idle here), keeping the VALU slots free.  Store is lane-dense.
    o_ref[...] = -pl.reciprocal(1.0 + jnp.exp(-z), approx=True)


def _choose_tile(B, requested):
    """Pick a lane-multiple batch tile: big enough to amortize per-step
    overhead, small enough to fit VMEM, and (when the batch allows it)
    yielding >= 2 grid steps so v7x's two TensorCores both get work."""
    b_up = pl.cdiv(B, _LANES) * _LANES
    tile = max(_LANES, (min(requested, b_up) // _LANES) * _LANES)
    if b_up >= 2 * _LANES:
        half = max(_LANES, ((b_up // 2) // _LANES) * _LANES)
        tile = min(tile, half)
    return tile


def hedging_strategy_forward(x, params, *, tile=4096):
    """x: (B, 1) float32; params in torch layout. Returns (B, 1) = -sigmoid(net(x))."""
    B = x.shape[0]
    H = params["w2"].shape[0]

    tile = _choose_tile(B, tile)
    n_tiles = pl.cdiv(B, tile)
    B_pad = n_tiles * tile

    # Lane-dense layout: batch along lanes (last dim).
    x_row = jnp.pad(x.reshape(1, B).astype(jnp.float32),
                    ((0, 0), (0, B_pad - B)))
    w1 = params["w1"].reshape(H, 1).astype(jnp.float32)      # torch (H, 1)
    b1 = params["b1"].reshape(H, 1).astype(jnp.float32)
    w2 = params["w2"].astype(jnp.bfloat16)                   # torch (H, H) = (out, in); bf16 MXU copy
    b2 = params["b2"].reshape(H, 1).astype(jnp.float32)
    w3 = params["w3"].reshape(H, 1).astype(jnp.float32)      # torch (1, H) -> column
    b3 = params["b3"].reshape(1).astype(jnp.float32)

    # Weights stay VMEM-resident across batch tiles (same block index each step).
    def resident(a):
        return pl.BlockSpec(a.shape, lambda i: (0,) * a.ndim)

    cost = pl.CostEstimate(
        flops=2 * H * H * B_pad + 6 * H * B_pad,      # MXU layer + VPU layers 1/3
        transcendentals=2 * B_pad,                    # exp + reciprocal per element
        bytes_accessed=4 * B_pad * 2 + 2 * H * H + 4 * (4 * H + 2),
    )

    out = pl.pallas_call(
        _mlp_kernel,
        out_shape=jax.ShapeDtypeStruct((1, B_pad), jnp.float32),
        grid=(n_tiles,),
        in_specs=[
            pl.BlockSpec((1, tile), lambda i: (0, i)),            # x, lane-tiled batch
            resident(w1), resident(b1),
            resident(w2), resident(b2),
            resident(w3),
            pl.BlockSpec(memory_space=pltpu.MemorySpace.SMEM),    # b3 scalar in SMEM
        ],
        out_specs=pl.BlockSpec((1, tile), lambda i: (0, i)),
        compiler_params=pltpu.CompilerParams(
            dimension_semantics=("parallel",),
            vmem_limit_bytes=32 * 1024 * 1024,   # headroom for large tiles (esp. v5e)
        ),
        cost_estimate=cost,
    )(x_row, w1, b1, w2, b2, w3, b3)
    return out[0, :B].reshape(B, 1)


def init_params(key):
    """Deterministic init matching HedgingStrategy1.__init__ (torch layouts)."""
    ks = jax.random.split(key, 6)

    def lin(kw, kb, fan_in, fan_out):
        bound = 1.0 / jnp.sqrt(float(fan_in))
        w = jax.random.uniform(kw, (fan_out, fan_in), jnp.float32, -bound, bound)
        b = jax.random.uniform(kb, (fan_out,), jnp.float32, -bound, bound)
        return w, b

    w1, b1 = lin(ks[0], ks[1], 1, HIDDEN)
    w2, b2 = lin(ks[2], ks[3], HIDDEN, HIDDEN)
    w3, b3 = lin(ks[4], ks[5], HIDDEN, 1)
    # self.cost = nn.Parameter(torch.tensor(7.0)) is unused in forward().
    return {"w1": w1, "b1": b1, "w2": w2, "b2": b2, "w3": w3, "b3": b3,
            "cost": jnp.float32(7.0)}


def _reference(x, p):
    h1 = jnp.maximum(x @ p["w1"].T + p["b1"], 0.0)
    h2 = jnp.maximum(h1 @ p["w2"].T + p["b2"], 0.0)
    z = h2 @ p["w3"].T + p["b3"]
    return -jax.nn.sigmoid(z)


if __name__ == "__main__":
    key = jax.random.PRNGKey(0)
    kx, kp = jax.random.split(key)
    params = init_params(kp)
    x = jax.random.normal(kx, (8, 1), jnp.float32)   # batch=8, in_features=1

    out = jax.block_until_ready(hedging_strategy_forward(x, params))
    ref = _reference(x, params)
    assert out.shape == (8, 1)
    # bf16 MXU operands + approx reciprocal: compare against the f32 reference
    # with a relaxed (but still structure-catching) tolerance.
    assert jnp.allclose(out, ref, atol=1e-2, rtol=1e-2), (out, ref)
    print("KERNEL_OK")
</pallas_src>

<mosaic_0001>
module attributes {stable_mosaic.version = 11 : i64} {
  func.func @_mlp_kernel(%arg0: i32, %arg1: memref<1x128xf32, #tpu.memory_space<vmem>>, %arg2: memref<128x1xf32, #tpu.memory_space<vmem>>, %arg3: memref<128x1xf32, #tpu.memory_space<vmem>>, %arg4: memref<128x128xbf16, #tpu.memory_space<vmem>>, %arg5: memref<128x1xf32, #tpu.memory_space<vmem>>, %arg6: memref<128x1xf32, #tpu.memory_space<vmem>>, %arg7: memref<1xf32, #tpu.memory_space<smem>>, %arg8: memref<1x128xf32, #tpu.memory_space<vmem>>) attributes {dimension_semantics = [#tpu.dimension_semantics<parallel>], iteration_bounds = array<i64: 1>, scalar_prefetch = 0 : i64, scratch_operands = 0 : i64, tpu.core_type = #tpu.core_type<tc>, window_params = [{transform_indices = @transform_0, window_bounds = array<i64: 1, 128>}, {pipeline_mode = #tpu.pipeline_mode<synchronous>, transform_indices = @transform_1, window_bounds = array<i64: 128, 1>}, {pipeline_mode = #tpu.pipeline_mode<synchronous>, transform_indices = @transform_2, window_bounds = array<i64: 128, 1>}, {pipeline_mode = #tpu.pipeline_mode<synchronous>, transform_indices = @transform_3, window_bounds = array<i64: 128, 128>}, {pipeline_mode = #tpu.pipeline_mode<synchronous>, transform_indices = @transform_4, window_bounds = array<i64: 128, 1>}, {pipeline_mode = #tpu.pipeline_mode<synchronous>, transform_indices = @transform_5, window_bounds = array<i64: 128, 1>}, {transform_indices = @transform_6, window_bounds = array<i64: 1>}, {transform_indices = @transform_7, window_bounds = array<i64: 1, 128>}]} {
    %c0 = arith.constant 0 : index
    %c0_0 = arith.constant 0 : index
    %0 = vector.load %arg1[%c0, %c0_0] : memref<1x128xf32, #tpu.memory_space<vmem>>, vector<1x128xf32>
    %c0_1 = arith.constant 0 : index
    %c0_2 = arith.constant 0 : index
    %1 = vector.load %arg2[%c0_1, %c0_2] : memref<128x1xf32, #tpu.memory_space<vmem>>, vector<128x1xf32>
    %2 = vector.broadcast %1 : vector<128x1xf32> to vector<128x128xf32>
    %3 = vector.broadcast %0 : vector<1x128xf32> to vector<128x128xf32>
    %4 = arith.mulf %2, %3 : vector<128x128xf32>
    %c0_3 = arith.constant 0 : index
    %c0_4 = arith.constant 0 : index
    %5 = vector.load %arg3[%c0_3, %c0_4] : memref<128x1xf32, #tpu.memory_space<vmem>>, vector<128x1xf32>
    %6 = vector.broadcast %5 : vector<128x1xf32> to vector<128x128xf32>
    %7 = arith.addf %4, %6 : vector<128x128xf32>
    %cst = arith.constant 0.000000e+00 : f32
    %8 = vector.broadcast %cst : f32 to vector<128x128xf32>
    %9 = arith.maximumf %7, %8 : vector<128x128xf32>
    %10 = arith.truncf %9 : vector<128x128xf32> to vector<128x128xbf16>
    %c0_5 = arith.constant 0 : index
    %c0_6 = arith.constant 0 : index
    %11 = vector.load %arg4[%c0_5, %c0_6] : memref<128x128xbf16, #tpu.memory_space<vmem>>, vector<128x128xbf16>
    %cst_7 = arith.constant dense<0.000000e+00> : vector<128x128xf32>
    %12 = tpu.matmul %11, %10, %cst_7 {dimension_numbers = #tpu.dot_dimension_numbers<[1], [0], [0], [1], [0, 0, 1, 1], [], []>} : vector<128x128xbf16>, vector<128x128xbf16>, vector<128x128xf32> -> vector<128x128xf32>
    %c0_8 = arith.constant 0 : index
    %c0_9 = arith.constant 0 : index
    %13 = vector.load %arg5[%c0_8, %c0_9] : memref<128x1xf32, #tpu.memory_space<vmem>>, vector<128x1xf32>
    %14 = vector.broadcast %13 : vector<128x1xf32> to vector<128x128xf32>
    %15 = arith.addf %12, %14 : vector<128x128xf32>
    %cst_10 = arith.constant 0.000000e+00 : f32
    %16 = vector.broadcast %cst_10 : f32 to vector<128x128xf32>
    %17 = arith.maximumf %15, %16 : vector<128x128xf32>
    %c0_11 = arith.constant 0 : index
    %c0_12 = arith.constant 0 : index
    %18 = vector.load %arg6[%c0_11, %c0_12] : memref<128x1xf32, #tpu.memory_space<vmem>>, vector<128x1xf32>
    %19 = vector.broadcast %18 : vector<128x1xf32> to vector<128x128xf32>
    %20 = arith.mulf %19, %17 : vector<128x128xf32>
    %cst_13 = arith.constant dense<0.000000e+00> : vector<128xf32>
    %21 = vector.multi_reduction <add>, %20, %cst_13 [0] : vector<128x128xf32> to vector<128xf32>
    %22 = vector.shape_cast %21 : vector<128xf32> to vector<1x128xf32>
    %c0_14 = arith.constant 0 : index
    %23 = memref.load %arg7[%c0_14] : memref<1xf32, #tpu.memory_space<smem>>
    %24 = vector.broadcast %23 : f32 to vector<1x128xf32>
    %25 = arith.addf %22, %24 : vector<1x128xf32>
    %cst_15 = arith.constant 0.000000e+00 : f32
    %26 = vector.broadcast %cst_15 : f32 to vector<1x128xf32>
    %27 = arith.subf %26, %25 : vector<1x128xf32>
    %28 = math.exp %27 : vector<1x128xf32>
    %cst_16 = arith.constant 1.000000e+00 : f32
    %29 = vector.broadcast %cst_16 : f32 to vector<1x128xf32>
    %30 = arith.addf %29, %28 : vector<1x128xf32>
    %31 = tpu.reciprocal %30 {approx = true} : vector<1x128xf32> -> vector<1x128xf32>
    %cst_17 = arith.constant 0.000000e+00 : f32
    %32 = vector.broadcast %cst_17 : f32 to vector<1x128xf32>
    %33 = arith.subf %32, %31 : vector<1x128xf32>
    %c0_18 = arith.constant 0 : index
    %c0_19 = arith.constant 0 : index
    %34 = vector.load %arg8[%c0_18, %c0_19] : memref<1x128xf32, #tpu.memory_space<vmem>>, vector<1x128xf32>
    tpu.vector_store %arg8[%c0_18, %c0_19], %33 {strides = array<i32>} : memref<1x128xf32, #tpu.memory_space<vmem>>, vector<1x128xf32>,
    return
  }
  func.func @transform_0(%arg0: i32) -> (i32, i32) {
    %c0_i32 = arith.constant 0 : i32
    %c0_i32_0 = arith.constant 0 : i32
    return %c0_i32, %arg0 : i32, i32
  }
  func.func @transform_1(%arg0: i32) -> (i32, i32) {
    %c0_i32 = arith.constant 0 : i32
    %c0_i32_0 = arith.constant 0 : i32
    %c0_i32_1 = arith.constant 0 : i32
    return %c0_i32, %c0_i32_0 : i32, i32
  }
  func.func @transform_2(%arg0: i32) -> (i32, i32) {
    %c0_i32 = arith.constant 0 : i32
    %c0_i32_0 = arith.constant 0 : i32
    %c0_i32_1 = arith.constant 0 : i32
    return %c0_i32, %c0_i32_0 : i32, i32
  }
  func.func @transform_3(%arg0: i32) -> (i32, i32) {
    %c0_i32 = arith.constant 0 : i32
    %c0_i32_0 = arith.constant 0 : i32
    %c0_i32_1 = arith.constant 0 : i32
    return %c0_i32, %c0_i32_0 : i32, i32
  }
  func.func @transform_4(%arg0: i32) -> (i32, i32) {
    %c0_i32 = arith.constant 0 : i32
    %c0_i32_0 = arith.constant 0 : i32
    %c0_i32_1 = arith.constant 0 : i32
    return %c0_i32, %c0_i32_0 : i32, i32
  }
  func.func @transform_5(%arg0: i32) -> (i32, i32) {
    %c0_i32 = arith.constant 0 : i32
    %c0_i32_0 = arith.constant 0 : i32
    %c0_i32_1 = arith.constant 0 : i32
    return %c0_i32, %c0_i32_0 : i32, i32
  }
  func.func @transform_6(%arg0: i32) -> i32 {
    %c0_i32 = arith.constant 0 : i32
    %c0_i32_0 = arith.constant 0 : i32
    return %c0_i32 : i32
  }
  func.func @transform_7(%arg0: i32) -> (i32, i32) {
    %c0_i32 = arith.constant 0 : i32
    %c0_i32_0 = arith.constant 0 : i32
    return %c0_i32, %arg0 : i32, i32
  }
}

</mosaic_0001>

<llo_original>
// kernel: tpu_custom_call.1
$region0: #{tpu_custom_call.1}
  #allocation0 [shape = 'u32[]', space=smem, size = 0x4, offset = 0x4, fixed_abs, tag = 'smem constant byte address 0x4 - core index']
  #allocation1 [shape = 'u32[144,128]{1,0:T(1,128)}', space=vmem, size = 0x12000, scoped, tag = 'internal scratch']
  #allocation2 [shape = 'f32[1]{0:T(128)S(6)}', space=smem, size = 0x200, scoped, tag = 'scoped memory for tpu_custom_call.1']
  %s0 = inlined_call_operand.vmem [shape: f32[1,128], index: 0, kind: input, shape index: {}]
  %s1 = inlined_call_operand.vmem [shape: f32[128,1], index: 1, kind: input, shape index: {}]
  %s2 = inlined_call_operand.vmem [shape: f32[128,1], index: 2, kind: input, shape index: {}]
  %s3 = inlined_call_operand.vmem [shape: bf16[128,128], index: 3, kind: input, shape index: {}]
  %s4 = inlined_call_operand.vmem [shape: f32[128,1], index: 4, kind: input, shape index: {}]
  %s5 = inlined_call_operand.vmem [shape: f32[128,1], index: 5, kind: input, shape index: {}]
  %s6 = inlined_call_operand.<no memory space> [shape: f32[1], index: 6, kind: input, shape index: {}]
  %s7 = inlined_call_operand.hbm [shape: f32[1,128], index: 7, kind: output, shape index: {}]
  %s8 = sld [smem:[#allocation0]]
  $region38: #{tpu_custom_call.1} parent=0
    _
  %s10 = ssub.s32 1, %s8
  %s11 = scalar_select 0, %s10, %s8
  %12 = sst [smem:[#allocation2]] %s6
  $region1: #{tpu_custom_call.1} parent=0
    #allocation3 [shape = 'u8[512]{0}', space=vmem, size = 0x400, scoped, tag = 'output window, operand 0, single buffered']
    #allocation4 [shape = 's32[1]{0}', space=sflag, size = 0x4, scoped, tag = 'scoped memory for tpu_custom_call.1']
    %13 = vsyncpa [#allocation4], 0
    // Predicated region
    $region2: #{tpu_custom_call.1} parent=1 // pred_check
      _
    $region3: #{tpu_custom_call.1} parent=1 // pred_check_branch
      %15 = sbr.rel (0) target = $region5
    $region4: #{tpu_custom_call.1} parent=1 // pred_region
      _
    $region5: #{tpu_custom_call.1} parent=1 // pred_fallthru
      _
    // Predicated region
    $region6: #{tpu_custom_call.1} parent=1 // pred_check
      _
    $region7: #{tpu_custom_call.1} parent=1 // pred_check_branch
      %17 = sbr.rel (0) target = $region9
    $region8: #{tpu_custom_call.1} parent=1 // pred_region
      _
    $region9: #{tpu_custom_call.1} parent=1 // pred_fallthru
      _
    // Predicated region
    $region10: #{tpu_custom_call.1} parent=1 // pred_check
      _
    $region11: #{tpu_custom_call.1} parent=1 // pred_check_branch
      %19 = sbr.rel (0) target = $region13
    $region12: #{tpu_custom_call.1} parent=1 // pred_region
      _
    $region13: #{tpu_custom_call.1} parent=1 // pred_fallthru
      _
    // Predicated region
    $region14: #{tpu_custom_call.1} parent=1 // pred_check
      _
    $region15: #{tpu_custom_call.1} parent=1 // pred_check_branch
      %21 = sbr.rel (0) target = $region17
    $region16: #{tpu_custom_call.1} parent=1 // pred_region
      _
    $region17: #{tpu_custom_call.1} parent=1 // pred_fallthru
      _
    // Predicated region
    $region18: #{tpu_custom_call.1} parent=1 // pred_check
      _
    $region19: #{tpu_custom_call.1} parent=1 // pred_check_branch
      %23 = sbr.rel (0) target = $region21
    $region20: #{tpu_custom_call.1} parent=1 // pred_region
      _
    $region21: #{tpu_custom_call.1} parent=1 // pred_fallthru
      _
    // Predicated region
    $region22: #{tpu_custom_call.1} parent=1 // pred_check
      _
    $region23: #{tpu_custom_call.1} parent=1 // pred_check_branch
      %25 = sbr.rel (0) target = $region25
    $region24: #{tpu_custom_call.1} parent=1 // pred_region
      _
    $region25: #{tpu_custom_call.1} parent=1 // pred_fallthru
      _
    // Predicated region
    $region26: #{tpu_custom_call.1} parent=1 // pred_check
      _
    $region27: #{tpu_custom_call.1} parent=1 // pred_check_branch
      %27 = sbr.rel (0) target = $region29
    $region28: #{tpu_custom_call.1} parent=1 // pred_region
      _
    $region29: #{tpu_custom_call.1} parent=1 // pred_fallthru
      _
    %v29 = vld [vmem:[%s0] sm:$0x1]
    %v30 = vld [vmem:[%s1] sm:$0xff]
    %v31 = vld [vmem:[%s1 + $0x8] sm:$0xff]
    %v32 = vld [vmem:[%s1 + $0x10] sm:$0xff]
    %v33 = vld [vmem:[%s1 + $0x18] sm:$0xff]
    %v34 = vld [vmem:[%s1 + $0x20] sm:$0xff]
    %v35 = vld [vmem:[%s1 + $0x28] sm:$0xff]
    %v36 = vld [vmem:[%s1 + $0x30] sm:$0xff]
    %v37 = vld [vmem:[%s1 + $0x38] sm:$0xff]
    %v38 = vld [vmem:[%s1 + $0x40] sm:$0xff]
    %v39 = vld [vmem:[%s1 + $0x48] sm:$0xff]
    %v40 = vld [vmem:[%s1 + $0x50] sm:$0xff]
    %v41 = vld [vmem:[%s1 + $0x58] sm:$0xff]
    %v42 = vld [vmem:[%s1 + $0x60] sm:$0xff]
    %v43 = vld [vmem:[%s1 + $0x68] sm:$0xff]
    %v44 = vld [vmem:[%s1 + $0x70] sm:$0xff]
    %v45 = vld [vmem:[%s1 + $0x78] sm:$0xff]
    %47 = vset.pattern.permute.xlu0 0
    %48 = vperm.xlu0 %47, %v30
    %v49 = vpop.permute.xlu0 %48
    %52 = vset.pattern.permute.xlu0 0
    %53 = vperm.xlu0 %52, %v31
    %v54 = vpop.permute.xlu0 %53
    %57 = vset.pattern.permute.xlu0 0
    %58 = vperm.xlu0 %57, %v32
    %v59 = vpop.permute.xlu0 %58
    %62 = vset.pattern.permute.xlu0 0
    %63 = vperm.xlu0 %62, %v33
    %v64 = vpop.permute.xlu0 %63
    %67 = vset.pattern.permute.xlu0 0
    %68 = vperm.xlu0 %67, %v34
    %v69 = vpop.permute.xlu0 %68
    %72 = vset.pattern.permute.xlu0 0
    %73 = vperm.xlu0 %72, %v35
    %v74 = vpop.permute.xlu0 %73
    %77 = vset.pattern.permute.xlu0 0
    %78 = vperm.xlu0 %77, %v36
    %v79 = vpop.permute.xlu0 %78
    %82 = vset.pattern.permute.xlu0 0
    %83 = vperm.xlu0 %82, %v37
    %v84 = vpop.permute.xlu0 %83
    %87 = vset.pattern.permute.xlu0 0
    %88 = vperm.xlu0 %87, %v38
    %v89 = vpop.permute.xlu0 %88
    %92 = vset.pattern.permute.xlu0 0
    %93 = vperm.xlu0 %92, %v39
    %v94 = vpop.permute.xlu0 %93
    %97 = vset.pattern.permute.xlu0 0
    %98 = vperm.xlu0 %97, %v40
    %v99 = vpop.permute.xlu0 %98
    %102 = vset.pattern.permute.xlu0 0
    %103 = vperm.xlu0 %102, %v41
    %v104 = vpop.permute.xlu0 %103
    %107 = vset.pattern.permute.xlu0 0
    %108 = vperm.xlu0 %107, %v42
    %v109 = vpop.permute.xlu0 %108
    %112 = vset.pattern.permute.xlu0 0
    %113 = vperm.xlu0 %112, %v43
    %v114 = vpop.permute.xlu0 %113
    %117 = vset.pattern.permute.xlu0 0
    %118 = vperm.xlu0 %117, %v44
    %v119 = vpop.permute.xlu0 %118
    %122 = vset.pattern.permute.xlu0 0
    %123 = vperm.xlu0 %122, %v45
    %v124 = vpop.permute.xlu0 %123
    %v127 = vlaneseq
    %v128 = vshrl.u32 %v127, 7
    %v129 = vsub.s32 0, %v128
    %v130 = vrot.slane %v29, %v129
    %v132 = vmul.f32 %v49, %v130
    %v133 = vmul.f32 %v54, %v130
    %v134 = vmul.f32 %v59, %v130
    %v135 = vmul.f32 %v64, %v130
    %v136 = vmul.f32 %v69, %v130
    %v137 = vmul.f32 %v74, %v130
    %v138 = vmul.f32 %v79, %v130
    %v139 = vmul.f32 %v84, %v130
    %v140 = vmul.f32 %v89, %v130
    %v141 = vmul.f32 %v94, %v130
    %v142 = vmul.f32 %v99, %v130
    %v143 = vmul.f32 %v104, %v130
    %v144 = vmul.f32 %v109, %v130
    %v145 = vmul.f32 %v114, %v130
    %v146 = vmul.f32 %v119, %v130
    %v147 = vmul.f32 %v124, %v130
    %v148 = vld [vmem:[%s2] sm:$0xff]
    %v149 = vld [vmem:[%s2 + $0x8] sm:$0xff]
    %v150 = vld [vmem:[%s2 + $0x10] sm:$0xff]
    %v151 = vld [vmem:[%s2 + $0x18] sm:$0xff]
    %v152 = vld [vmem:[%s2 + $0x20] sm:$0xff]
    %v153 = vld [vmem:[%s2 + $0x28] sm:$0xff]
    %v154 = vld [vmem:[%s2 + $0x30] sm:$0xff]
    %v155 = vld [vmem:[%s2 + $0x38] sm:$0xff]
    %v156 = vld [vmem:[%s2 + $0x40] sm:$0xff]
    %v157 = vld [vmem:[%s2 + $0x48] sm:$0xff]
    %v158 = vld [vmem:[%s2 + $0x50] sm:$0xff]
    %v159 = vld [vmem:[%s2 + $0x58] sm:$0xff]
    %v160 = vld [vmem:[%s2 + $0x60] sm:$0xff]
    %v161 = vld [vmem:[%s2 + $0x68] sm:$0xff]
    %v162 = vld [vmem:[%s2 + $0x70] sm:$0xff]
    %v163 = vld [vmem:[%s2 + $0x78] sm:$0xff]
    %165 = vset.pattern.permute.xlu0 0
    %166 = vperm.xlu0 %165, %v148
    %v167 = vpop.permute.xlu0 %166
    %170 = vset.pattern.permute.xlu0 0
    %171 = vperm.xlu0 %170, %v149
    %v172 = vpop.permute.xlu0 %171
    %175 = vset.pattern.permute.xlu0 0
    %176 = vperm.xlu0 %175, %v150
    %v177 = vpop.permute.xlu0 %176
    %180 = vset.pattern.permute.xlu0 0
    %181 = vperm.xlu0 %180, %v151
    %v182 = vpop.permute.xlu0 %181
    %185 = vset.pattern.permute.xlu0 0
    %186 = vperm.xlu0 %185, %v152
    %v187 = vpop.permute.xlu0 %186
    %190 = vset.pattern.permute.xlu0 0
    %191 = vperm.xlu0 %190, %v153
    %v192 = vpop.permute.xlu0 %191
    %195 = vset.pattern.permute.xlu0 0
    %196 = vperm.xlu0 %195, %v154
    %v197 = vpop.permute.xlu0 %196
    %200 = vset.pattern.permute.xlu0 0
    %201 = vperm.xlu0 %200, %v155
    %v202 = vpop.permute.xlu0 %201
    %205 = vset.pattern.permute.xlu0 0
    %206 = vperm.xlu0 %205, %v156
    %v207 = vpop.permute.xlu0 %206
    %210 = vset.pattern.permute.xlu0 0
    %211 = vperm.xlu0 %210, %v157
    %v212 = vpop.permute.xlu0 %211
    %215 = vset.pattern.permute.xlu0 0
    %216 = vperm.xlu0 %215, %v158
    %v217 = vpop.permute.xlu0 %216
    %220 = vset.pattern.permute.xlu0 0
    %221 = vperm.xlu0 %220, %v159
    %v222 = vpop.permute.xlu0 %221
    %225 = vset.pattern.permute.xlu0 0
    %226 = vperm.xlu0 %225, %v160
    %v227 = vpop.permute.xlu0 %226
    %230 = vset.pattern.permute.xlu0 0
    %231 = vperm.xlu0 %230, %v161
    %v232 = vpop.permute.xlu0 %231
    %235 = vset.pattern.permute.xlu0 0
    %236 = vperm.xlu0 %235, %v162
    %v237 = vpop.permute.xlu0 %236
    %240 = vset.pattern.permute.xlu0 0
    %241 = vperm.xlu0 %240, %v163
    %v242 = vpop.permute.xlu0 %241
    %v244 = vadd.f32 %v132, %v167
    %v245 = vadd.f32 %v133, %v172
    %v246 = vadd.f32 %v134, %v177
    %v247 = vadd.f32 %v135, %v182
    %v248 = vadd.f32 %v136, %v187
    %v249 = vadd.f32 %v137, %v192
    %v250 = vadd.f32 %v138, %v197
    %v251 = vadd.f32 %v139, %v202
    %v252 = vadd.f32 %v140, %v207
    %v253 = vadd.f32 %v141, %v212
    %v254 = vadd.f32 %v142, %v217
    %v255 = vadd.f32 %v143, %v222
    %v256 = vadd.f32 %v144, %v227
    %v257 = vadd.f32 %v145, %v232
    %v258 = vadd.f32 %v146, %v237
    %v259 = vadd.f32 %v147, %v242
    %v260 = vmax.f32 %v244, 0.0
    %v261 = vmax.f32 %v245, 0.0
    %v262 = vmax.f32 %v246, 0.0
    %v263 = vmax.f32 %v247, 0.0
    %v264 = vmax.f32 %v248, 0.0
    %v265 = vmax.f32 %v249, 0.0
    %v266 = vmax.f32 %v250, 0.0
    %v267 = vmax.f32 %v251, 0.0
    %v268 = vmax.f32 %v252, 0.0
    %v269 = vmax.f32 %v253, 0.0
    %v270 = vmax.f32 %v254, 0.0
    %v271 = vmax.f32 %v255, 0.0
    %v272 = vmax.f32 %v256, 0.0
    %v273 = vmax.f32 %v257, 0.0
    %v274 = vmax.f32 %v258, 0.0
    %v275 = vmax.f32 %v259, 0.0
    %v276 = vpack.c.bf16 %v261, %v260
    %v277 = vpack.c.bf16 %v263, %v262
    %v278 = vpack.c.bf16 %v265, %v264
    %v279 = vpack.c.bf16 %v267, %v266
    %v280 = vpack.c.bf16 %v269, %v268
    %v281 = vpack.c.bf16 %v271, %v270
    %v282 = vpack.c.bf16 %v273, %v272
    %v283 = vpack.c.bf16 %v275, %v274
    %v284 = vld [vmem:[%s3] sm:$0xf]
    %v285 = vld [vmem:[%s3 + $0x4] sm:$0xf]
    %v286 = vld [vmem:[%s3 + $0x8] sm:$0xf]
    %v287 = vld [vmem:[%s3 + $0xc] sm:$0xf]
    %v288 = vld [vmem:[%s3 + $0x10] sm:$0xf]
    %v289 = vld [vmem:[%s3 + $0x14] sm:$0xf]
    %v290 = vld [vmem:[%s3 + $0x18] sm:$0xf]
    %v291 = vld [vmem:[%s3 + $0x1c] sm:$0xf]
    %v292 = vld [vmem:[%s3 + $0x20] sm:$0xf]
    %v293 = vld [vmem:[%s3 + $0x24] sm:$0xf]
    %v294 = vld [vmem:[%s3 + $0x28] sm:$0xf]
    %v295 = vld [vmem:[%s3 + $0x2c] sm:$0xf]
    %v296 = vld [vmem:[%s3 + $0x30] sm:$0xf]
    %v297 = vld [vmem:[%s3 + $0x34] sm:$0xf]
    %v298 = vld [vmem:[%s3 + $0x38] sm:$0xf]
    %v299 = vld [vmem:[%s3 + $0x3c] sm:$0xf]
    %v300 = vld [vmem:[%s4] sm:$0xff]
    %v301 = vld [vmem:[%s4 + $0x8] sm:$0xff]
    %v302 = vld [vmem:[%s4 + $0x10] sm:$0xff]
    %v303 = vld [vmem:[%s4 + $0x18] sm:$0xff]
    %v304 = vld [vmem:[%s4 + $0x20] sm:$0xff]
    %v305 = vld [vmem:[%s4 + $0x28] sm:$0xff]
    %v306 = vld [vmem:[%s4 + $0x30] sm:$0xff]
    %v307 = vld [vmem:[%s4 + $0x38] sm:$0xff]
    %v308 = vld [vmem:[%s4 + $0x40] sm:$0xff]
    %v309 = vld [vmem:[%s4 + $0x48] sm:$0xff]
    %v310 = vld [vmem:[%s4 + $0x50] sm:$0xff]
    %v311 = vld [vmem:[%s4 + $0x58] sm:$0xff]
    %v312 = vld [vmem:[%s4 + $0x60] sm:$0xff]
    %v313 = vld [vmem:[%s4 + $0x68] sm:$0xff]
    %v314 = vld [vmem:[%s4 + $0x70] sm:$0xff]
    %v315 = vld [vmem:[%s4 + $0x78] sm:$0xff]
    %317 = vset.pattern.permute.xlu0 0
    %318 = vperm.xlu0 %317, %v300
    %v319 = vpop.permute.xlu0 %318
    %322 = vset.pattern.permute.xlu0 0
    %323 = vperm.xlu0 %322, %v301
    %v324 = vpop.permute.xlu0 %323
    %327 = vset.pattern.permute.xlu0 0
    %328 = vperm.xlu0 %327, %v302
    %v329 = vpop.permute.xlu0 %328
    %332 = vset.pattern.permute.xlu0 0
    %333 = vperm.xlu0 %332, %v303
    %v334 = vpop.permute.xlu0 %333
    %337 = vset.pattern.permute.xlu0 0
    %338 = vperm.xlu0 %337, %v304
    %v339 = vpop.permute.xlu0 %338
    %342 = vset.pattern.permute.xlu0 0
    %343 = vperm.xlu0 %342, %v305
    %v344 = vpop.permute.xlu0 %343
    %347 = vset.pattern.permute.xlu0 0
    %348 = vperm.xlu0 %347, %v306
    %v349 = vpop.permute.xlu0 %348
    %352 = vset.pattern.permute.xlu0 0
    %353 = vperm.xlu0 %352, %v307
    %v354 = vpop.permute.xlu0 %353
    %357 = vset.pattern.permute.xlu0 0
    %358 = vperm.xlu0 %357, %v308
    %v359 = vpop.permute.xlu0 %358
    %362 = vset.pattern.permute.xlu0 0
    %363 = vperm.xlu0 %362, %v309
    %v364 = vpop.permute.xlu0 %363
    %367 = vset.pattern.permute.xlu0 0
    %368 = vperm.xlu0 %367, %v310
    %v369 = vpop.permute.xlu0 %368
    %372 = vset.pattern.permute.xlu0 0
    %373 = vperm.xlu0 %372, %v311
    %v374 = vpop.permute.xlu0 %373
    %377 = vset.pattern.permute.xlu0 0
    %378 = vperm.xlu0 %377, %v312
    %v379 = vpop.permute.xlu0 %378
    %382 = vset.pattern.permute.xlu0 0
    %383 = vperm.xlu0 %382, %v313
    %v384 = vpop.permute.xlu0 %383
    %387 = vset.pattern.permute.xlu0 0
    %388 = vperm.xlu0 %387, %v314
    %v389 = vpop.permute.xlu0 %388
    %392 = vset.pattern.permute.xlu0 0
    %393 = vperm.xlu0 %392, %v315
    %v394 = vpop.permute.xlu0 %393
    %v412 = vunpack.c.l.b16 %v284
    %v413 = vunpack.c.l.b16 %v285
    %v414 = vunpack.c.l.b16 %v286
    %v415 = vunpack.c.l.b16 %v287
    %v416 = vunpack.c.l.b16 %v288
    %v417 = vunpack.c.l.b16 %v289
    %v418 = vunpack.c.l.b16 %v290
    %v419 = vunpack.c.l.b16 %v291
    %v420 = vunpack.c.l.b16 %v292
    %v421 = vunpack.c.l.b16 %v293
    %v422 = vunpack.c.l.b16 %v294
    %v423 = vunpack.c.l.b16 %v295
    %v424 = vunpack.c.l.b16 %v296
    %v425 = vunpack.c.l.b16 %v297
    %v426 = vunpack.c.l.b16 %v298
    %v427 = vunpack.c.l.b16 %v299
    %v428 = vpack.c.b16 %v413, %v412
    %v429 = vpack.c.b16 %v415, %v414
    %v430 = vpack.c.b16 %v417, %v416
    %v431 = vpack.c.b16 %v419, %v418
    %v432 = vpack.c.b16 %v421, %v420
    %v433 = vpack.c.b16 %v423, %v422
    %v434 = vpack.c.b16 %v425, %v424
    %v435 = vpack.c.b16 %v427, %v426
    %444 = vmatprep.subr.bf16.mxu0 0
    %445 = vmatpush1.bf16.msra.mxu0 %v276
    %446 = vmatprep.subr.bf16.mxu0 0
    %447 = vmatpush1.bf16.msra.mxu0 %v277
    %448 = vmatprep.subr.bf16.mxu0 0
    %449 = vmatpush1.bf16.msra.mxu0 %v278
    %450 = vmatprep.subr.bf16.mxu0 0
    %451 = vmatpush1.bf16.msra.mxu0 %v279
    %452 = vmatprep.subr.bf16.mxu0 0
    %453 = vmatpush1.bf16.msra.mxu0 %v280
    %454 = vmatprep.subr.bf16.mxu0 0
    %455 = vmatpush1.bf16.msra.mxu0 %v281
    %456 = vmatprep.subr.bf16.mxu0 0
    %457 = vmatpush1.bf16.msra.mxu0 %v282
    %458 = vmatprep.subr.bf16.mxu0 0
    %459 = vmatpush1.bf16.msra.mxu0 %v283
    %460 = vmatprep.subr.bf16.mxu0 0
    %461 = vmatpush1.bf16.msra.mxu0 0
    %462 = vmatprep.subr.bf16.mxu0 0
    %463 = vmatpush1.bf16.msra.mxu0 0
    %464 = vmatprep.subr.bf16.mxu0 0
    %465 = vmatpush1.bf16.msra.mxu0 0
    %466 = vmatprep.subr.bf16.mxu0 0
    %467 = vmatpush1.bf16.msra.mxu0 0
    %468 = vmatprep.subr.bf16.mxu0 0
    %469 = vmatpush1.bf16.msra.mxu0 0
    %470 = vmatprep.subr.bf16.mxu0 0
    %471 = vmatpush1.bf16.msra.mxu0 0
    %472 = vmatprep.subr.bf16.mxu0 0
    %473 = vmatpush1.bf16.msra.mxu0 0
    %474 = vmatprep.subr.bf16.mxu0 0
    %475 = vmatpush1.bf16.msra.mxu0 0
    %476 = vmatprep.mubr.bf16.mxu0 0
    %477 = vmatmul.mubr.bf16.gmra.mrb[0].mxu0 %v428
    %v478 = vpop.f32.mrb[0].mxu0
    %v479 = vadd.f32 %v319, %v478
    %v480 = vpop.f32.mrb[0].mxu0
    %v481 = vpop.f32.mrb[0].mxu0
    %v482 = vadd.f32 %v324, %v481
    %v483 = vpop.f32.mrb[0].mxu0
    %484 = vmatprep.mubr.bf16.mxu0 0
    %485 = vmatmul.mubr.bf16.gmra.mrb[0].mxu0 %v429
    %v486 = vpop.f32.mrb[0].mxu0
    %v487 = vadd.f32 %v329, %v486
    %v488 = vpop.f32.mrb[0].mxu0
    %v489 = vpop.f32.mrb[0].mxu0
    %v490 = vadd.f32 %v334, %v489
    %v491 = vpop.f32.mrb[0].mxu0
    %492 = vmatprep.mubr.bf16.mxu0 0
    %493 = vmatmul.mubr.bf16.gmra.mrb[0].mxu0 %v430
    %v494 = vpop.f32.mrb[0].mxu0
    %v495 = vadd.f32 %v339, %v494
    %v496 = vpop.f32.mrb[0].mxu0
    %v497 = vpop.f32.mrb[0].mxu0
    %v498 = vadd.f32 %v344, %v497
    %v499 = vpop.f32.mrb[0].mxu0
    %500 = vmatprep.mubr.bf16.mxu0 0
    %501 = vmatmul.mubr.bf16.gmra.mrb[0].mxu0 %v431
    %v502 = vpop.f32.mrb[0].mxu0
    %v503 = vadd.f32 %v349, %v502
    %v504 = vpop.f32.mrb[0].mxu0
    %v505 = vpop.f32.mrb[0].mxu0
    %v506 = vadd.f32 %v354, %v505
    %v507 = vpop.f32.mrb[0].mxu0
    %508 = vmatprep.mubr.bf16.mxu0 0
    %509 = vmatmul.mubr.bf16.gmra.mrb[0].mxu0 %v432
    %v510 = vpop.f32.mrb[0].mxu0
    %v511 = vadd.f32 %v359, %v510
    %v512 = vpop.f32.mrb[0].mxu0
    %v513 = vpop.f32.mrb[0].mxu0
    %v514 = vadd.f32 %v364, %v513
    %v515 = vpop.f32.mrb[0].mxu0
    %516 = vmatprep.mubr.bf16.mxu0 0
    %517 = vmatmul.mubr.bf16.gmra.mrb[0].mxu0 %v433
    %v518 = vpop.f32.mrb[0].mxu0
    %v519 = vadd.f32 %v369, %v518
    %v520 = vpop.f32.mrb[0].mxu0
    %v521 = vpop.f32.mrb[0].mxu0
    %v522 = vadd.f32 %v374, %v521
    %v523 = vpop.f32.mrb[0].mxu0
    %524 = vmatprep.mubr.bf16.mxu0 0
    %525 = vmatmul.mubr.bf16.gmra.mrb[0].mxu0 %v434
    %v526 = vpop.f32.mrb[0].mxu0
    %v527 = vadd.f32 %v379, %v526
    %v528 = vpop.f32.mrb[0].mxu0
    %v529 = vpop.f32.mrb[0].mxu0
    %v530 = vadd.f32 %v384, %v529
    %v531 = vpop.f32.mrb[0].mxu0
    %532 = vmatprep.mubr.bf16.mxu0 0
    %533 = vmatmul.mubr.bf16.gmra.mrb[0].mxu0 %v435
    %v534 = vpop.f32.mrb[0].mxu0
    %v535 = vadd.f32 %v389, %v534
    %v536 = vpop.f32.mrb[0].mxu0
    %v537 = vpop.f32.mrb[0].mxu0
    %v538 = vadd.f32 %v394, %v537
    %v539 = vpop.f32.mrb[0].mxu0
    %540 = vdwg.mxu0
    %v541 = vmax.f32 %v479, 0.0
    %v542 = vmax.f32 %v482, 0.0
    %v543 = vmax.f32 %v487, 0.0
    %v544 = vmax.f32 %v490, 0.0
    %v545 = vmax.f32 %v495, 0.0
    %v546 = vmax.f32 %v498, 0.0
    %v547 = vmax.f32 %v503, 0.0
    %v548 = vmax.f32 %v506, 0.0
    %v549 = vmax.f32 %v511, 0.0
    %v550 = vmax.f32 %v514, 0.0
    %v551 = vmax.f32 %v519, 0.0
    %v552 = vmax.f32 %v522, 0.0
    %v553 = vmax.f32 %v527, 0.0
    %v554 = vmax.f32 %v530, 0.0
    %v555 = vmax.f32 %v535, 0.0
    %v556 = vmax.f32 %v538, 0.0
    %v557 = vld [vmem:[%s5] sm:$0xff]
    %v558 = vld [vmem:[%s5 + $0x8] sm:$0xff]
    %v559 = vld [vmem:[%s5 + $0x10] sm:$0xff]
    %v560 = vld [vmem:[%s5 + $0x18] sm:$0xff]
    %v561 = vld [vmem:[%s5 + $0x20] sm:$0xff]
    %v562 = vld [vmem:[%s5 + $0x28] sm:$0xff]
    %v563 = vld [vmem:[%s5 + $0x30] sm:$0xff]
    %v564 = vld [vmem:[%s5 + $0x38] sm:$0xff]
    %v565 = vld [vmem:[%s5 + $0x40] sm:$0xff]
    %v566 = vld [vmem:[%s5 + $0x48] sm:$0xff]
    %v567 = vld [vmem:[%s5 + $0x50] sm:$0xff]
    %v568 = vld [vmem:[%s5 + $0x58] sm:$0xff]
    %v569 = vld [vmem:[%s5 + $0x60] sm:$0xff]
    %v570 = vld [vmem:[%s5 + $0x68] sm:$0xff]
    %v571 = vld [vmem:[%s5 + $0x70] sm:$0xff]
    %v572 = vld [vmem:[%s5 + $0x78] sm:$0xff]
    %574 = vset.pattern.permute.xlu0 0
    %575 = vperm.xlu0 %574, %v557
    %v576 = vpop.permute.xlu0 %575
    %579 = vset.pattern.permute.xlu0 0
    %580 = vperm.xlu0 %579, %v558
    %v581 = vpop.permute.xlu0 %580
    %584 = vset.pattern.permute.xlu0 0
    %585 = vperm.xlu0 %584, %v559
    %v586 = vpop.permute.xlu0 %585
    %589 = vset.pattern.permute.xlu0 0
    %590 = vperm.xlu0 %589, %v560
    %v591 = vpop.permute.xlu0 %590
    %594 = vset.pattern.permute.xlu0 0
    %595 = vperm.xlu0 %594, %v561
    %v596 = vpop.permute.xlu0 %595
    %599 = vset.pattern.permute.xlu0 0
    %600 = vperm.xlu0 %599, %v562
    %v601 = vpop.permute.xlu0 %600
    %604 = vset.pattern.permute.xlu0 0
    %605 = vperm.xlu0 %604, %v563
    %v606 = vpop.permute.xlu0 %605
    %609 = vset.pattern.permute.xlu0 0
    %610 = vperm.xlu0 %609, %v564
    %v611 = vpop.permute.xlu0 %610
    %614 = vset.pattern.permute.xlu0 0
    %615 = vperm.xlu0 %614, %v565
    %v616 = vpop.permute.xlu0 %615
    %619 = vset.pattern.permute.xlu0 0
    %620 = vperm.xlu0 %619, %v566
    %v621 = vpop.permute.xlu0 %620
    %624 = vset.pattern.permute.xlu0 0
    %625 = vperm.xlu0 %624, %v567
    %v626 = vpop.permute.xlu0 %625
    %629 = vset.pattern.permute.xlu0 0
    %630 = vperm.xlu0 %629, %v568
    %v631 = vpop.permute.xlu0 %630
    %634 = vset.pattern.permute.xlu0 0
    %635 = vperm.xlu0 %634, %v569
    %v636 = vpop.permute.xlu0 %635
    %639 = vset.pattern.permute.xlu0 0
    %640 = vperm.xlu0 %639, %v570
    %v641 = vpop.permute.xlu0 %640
    %644 = vset.pattern.permute.xlu0 0
    %645 = vperm.xlu0 %644, %v571
    %v646 = vpop.permute.xlu0 %645
    %649 = vset.pattern.permute.xlu0 0
    %650 = vperm.xlu0 %649, %v572
    %v651 = vpop.permute.xlu0 %650
    %v653 = vmul.f32 %v576, %v541
    %v654 = vmul.f32 %v581, %v542
    %v655 = vmul.f32 %v586, %v543
    %v656 = vmul.f32 %v591, %v544
    %v657 = vmul.f32 %v596, %v545
    %v658 = vmul.f32 %v601, %v546
    %v659 = vmul.f32 %v606, %v547
    %v660 = vmul.f32 %v611, %v548
    %v661 = vmul.f32 %v616, %v549
    %v662 = vmul.f32 %v621, %v550
    %v663 = vmul.f32 %v626, %v551
    %v664 = vmul.f32 %v631, %v552
    %v665 = vmul.f32 %v636, %v553
    %v666 = vmul.f32 %v641, %v554
    %v667 = vmul.f32 %v646, %v555
    %v668 = vmul.f32 %v651, %v556
    %v669 = vadd.f32 %v653, %v654
    %v670 = vadd.f32 %v669, %v655
    %v671 = vadd.f32 %v670, %v656
    %v672 = vadd.f32 %v671, %v657
    %v673 = vadd.f32 %v672, %v658
    %v674 = vadd.f32 %v673, %v659
    %v675 = vadd.f32 %v674, %v660
    %v676 = vadd.f32 %v675, %v661
    %v677 = vadd.f32 %v676, %v662
    %v678 = vadd.f32 %v677, %v663
    %v679 = vadd.f32 %v678, %v664
    %v680 = vadd.f32 %v679, %v665
    %v681 = vadd.f32 %v680, %v666
    %v682 = vadd.f32 %v681, %v667
    %v683 = vadd.f32 %v682, %v668
    %v684 = vrot.slane %v683, 4
    %v685 = vadd.f32 %v683, %v684
    %v686 = vrot.slane %v685, 2
    %v687 = vadd.f32 %v685, %v686
    %v688 = vrot.slane %v687, 1
    %v689 = vadd.f32 %v687, %v688
    %s690 = sld [smem:[#allocation2]]
    %v691 = vstv %s690
    %v692 = vadd.f32 %v689, %v691
    %v693 = vsub.f32 0.0, %v692
    %v694 = vmul.f32 %v693, 1.442695
    %v695 = vpow.pop %v694
    %v696 = vadd.f32 %v695, 1.0
    %v697 = vrcp.pop %v696
    %v698 = vsub.f32 0.0, %v697
    %699 = vst [vmem:[#allocation3] sm:$0x1] %v698
    // Predicated region
    $region30: #{tpu_custom_call.1} parent=1 // pred_check
      _
    $region31: #{tpu_custom_call.1} parent=1 // pred_check_branch
      %701 = sbr.rel (0) target = $region33
    $region32: #{tpu_custom_call.1} parent=1 // pred_region
      %s703 = ssub.s32 16, 16
      %704 = vsyncadd [#allocation4], %s703
      %s706 = sshll.u32 [#allocation3], 4
      %s707 = int_to_ptr.vmem [resolvable:$true] %s706
      %709 = dma.vmem_to_hbm [thread:$0]  %s707, 16, %s7, [#allocation4]
    $region33: #{tpu_custom_call.1} parent=1 // pred_fallthru
      _
    // Predicated region
    $region34: #{tpu_custom_call.1} parent=1 // pred_check
      _
    $region35: #{tpu_custom_call.1} parent=1 // pred_check_branch
      %711 = sbr.rel (0) target = $region37
    $region36: #{tpu_custom_call.1} parent=1 // pred_region
      %712 = dma.done [#allocation4], 16
    $region37: #{tpu_custom_call.1} parent=1 // pred_fallthru
      _
    %713 = vsyncpa [#allocation4], 1

</llo_original>
